<compile_context>
chip_gen: v6e
topology: v6e:2x2x1
jax: 0.10.0
libtpu: 0.0.40
codegen_flags: <defaults>
</compile_context>

<pallas_src>
import math

import jax
import jax.numpy as jnp
from jax.experimental import pallas as pl
from jax.experimental.pallas import tpu as pltpu

EPS = 1e-5  # nn.InstanceNorm1d default


# ---------------------------------------------------------------------------
# Kernel
# ---------------------------------------------------------------------------
def _make_kernel(tc, n_ctiles):
    def adains_kernel(ss_ref, x_ref, o_ref):
        # ss_ref: (2, C)  resident per batch element; row 0 = scale, row 1 = shift
        # x_ref/o_ref: (L, tc)  one batch element, one channel tile
        x = x_ref[...].astype(jnp.float32)                      # (L, tc)
        inv_l = 1.0 / x.shape[0]

        # Two-pass biased mean/var over the sequence axis (sublanes), f32.
        mean = jnp.sum(x, axis=0, keepdims=True) * inv_l        # (1, tc)
        xc = x - mean
        var = jnp.sum(xc * xc, axis=0, keepdims=True) * inv_l   # (1, tc)
        x_norm = xc * jax.lax.rsqrt(var + EPS)

        if n_ctiles == 1:
            ss = ss_ref[...]                                    # (2, tc == C)
        else:
            start = pl.multiple_of(pl.program_id(1) * tc, 128)
            ss = ss_ref[:, pl.ds(start, tc)]                    # (2, tc)
        scale = ss[0:1, :]
        shift = ss[1:2, :]
        o_ref[...] = (x_norm * (1.0 + scale) + shift).astype(o_ref.dtype)

    return adains_kernel


# ---------------------------------------------------------------------------
# Wrapper-side helpers
# ---------------------------------------------------------------------------
def sinusoidal_pos_emb(t, num_steps, dim, rescale_steps=4000.0):
    # Matches SinusoidalPosEmb.forward exactly.
    t = t.astype(jnp.float32) / float(num_steps) * float(rescale_steps)
    half_dim = dim // 2
    emb = math.log(10000.0) / (half_dim - 1)
    emb = jnp.exp(jnp.arange(half_dim, dtype=jnp.float32) * -emb)
    emb = t[:, None] * emb[None, :]
    return jnp.concatenate([jnp.sin(emb), jnp.cos(emb)], axis=-1)  # (B, dim)


def _pick_vmem_limit_bytes():
    """Generation-aware scoped-VMEM limit (leave headroom on v7x's 64 MiB)."""
    try:
        phys = pltpu.get_tpu_info().vmem_capacity_bytes
    except Exception:
        phys = 64 << 20  # conservative default (v7x per-TC VMEM)
    if phys <= (64 << 20):
        return 40 << 20   # v7x: never request the entire physical VMEM
    return 64 << 20       # v5e / v6e (128 MiB physical)


def _choose_c_tile(B, C, L, x_bytes, vmem_limit_bytes):
    """Channel tile.  Prefers tc == C (contiguous rows, lane-dense stores);
    otherwise the largest multiple-of-128 divisor of C whose per-step VMEM
    footprint (double-buffered in+out blocks in x dtype plus ~3 f32
    temporaries per element) fits the budget."""
    budget = max(vmem_limit_bytes - (8 << 20), 4 << 20)   # compiler headroom
    per_chan = L * (4 * x_bytes + 3 * 4)                  # 2x in + 2x out + f32 temps
    max_tc = max(1, budget // per_chan)

    if C % 128 != 0:
        # Small / irregular C: single full-extent tile (masked partial stores).
        # TODO(synk): no further VMEM fallback for irregular C with very long
        # L; real model sizes use C % 128 == 0 and take the lane-dense path.
        return C

    candidates = [d for d in range(128, C + 1, 128) if C % d == 0]
    tc = None
    for d in reversed(candidates):            # largest (contiguous) first
        if d <= max_tc:
            tc = d
            break
    if tc is None:
        # Even a 128-wide tile exceeds the budget (very long L).
        # TODO(synk): add an L-chunked two-pass path (stats accumulation over
        # an 'arbitrary' L grid axis) for L so long that (L,128) blocks do not
        # fit in scoped VMEM.
        tc = candidates[0]

    # v7x has 2 TensorCores per chip; guarantee >= 2 parallel grid steps when
    # a single batch element would otherwise map to a single tile.
    if B == 1 and C // tc < 2 and (C // 2) % 128 == 0 and (C // 2) <= max_tc:
        tc = C // 2
    return tc


# ---------------------------------------------------------------------------
# Public entry point
# ---------------------------------------------------------------------------
def ada_ins_norm(x, timestep, w, b, *, diffusion_step):
    """x: (B, L, C), timestep: (B,) int32, w: (C, 2C), b: (2C,)."""
    B, L, C = x.shape

    # Hoisted: SiLU + Linear for the whole batch (one proper MXU matmul).
    emb = sinusoidal_pos_emb(timestep, diffusion_step, C)            # (B, C)
    h = emb * jax.nn.sigmoid(emb)                                    # SiLU
    lin = jnp.dot(h, w, preferred_element_type=jnp.float32) + b      # (B, 2C)
    ss = lin.reshape(B, 2, C).astype(jnp.float32)   # [:,0,:]=scale, [:,1,:]=shift

    vmem_limit = _pick_vmem_limit_bytes()
    tc = _choose_c_tile(B, C, L, x.dtype.itemsize, vmem_limit)
    n_ct = C // tc
    grid = (B, n_ct)

    return pl.pallas_call(
        _make_kernel(tc, n_ct),
        out_shape=jax.ShapeDtypeStruct((B, L, C), x.dtype),
        grid_spec=pltpu.PrefetchScalarGridSpec(
            num_scalar_prefetch=0,
            grid=grid,
            in_specs=[
                # scale/shift: index map depends only on the batch index, so
                # the (2, C) block stays VMEM-resident across channel tiles.
                pl.BlockSpec((pl.Squeezed(), 2, C), lambda i, j: (i, 0, 0)),
                # x: one (L, tc) tile; tc == C gives fully contiguous rows.
                pl.BlockSpec((pl.Squeezed(), L, tc), lambda i, j: (i, 0, j)),
            ],
            out_specs=pl.BlockSpec((pl.Squeezed(), L, tc),
                                   lambda i, j: (i, 0, j)),
        ),
        compiler_params=pltpu.CompilerParams(
            dimension_semantics=("parallel", "parallel"),
            vmem_limit_bytes=vmem_limit),
    )(ss, x)


# ---------------------------------------------------------------------------
# Pure-JAX reference + self-test
# ---------------------------------------------------------------------------
def ada_ins_norm_ref(x, timestep, w, b, *, diffusion_step):
    B, L, C = x.shape
    emb = sinusoidal_pos_emb(timestep, diffusion_step, C)
    h = emb * jax.nn.sigmoid(emb)
    lin = h @ w + b                                # (B, 2C)
    scale = lin[:, None, :C]
    shift = lin[:, None, C:]
    mean = jnp.mean(x, axis=1, keepdims=True)
    var = jnp.mean(jnp.square(x - mean), axis=1, keepdims=True)
    x_norm = (x - mean) / jnp.sqrt(var + EPS)
    return x_norm * (1.0 + scale) + shift


def _run_case(key, B, L, C, diffusion_step):
    kx, kw, kb, kt = jax.random.split(key, 4)
    x = jax.random.normal(kx, (B, L, C), dtype=jnp.float32)
    timestep = jax.random.randint(kt, (B,), 0, diffusion_step, dtype=jnp.int32)

    # Deterministic "Linear(C, 2C)" params (PyTorch-style uniform init bounds).
    bound = 1.0 / math.sqrt(C)
    w = jax.random.uniform(kw, (C, 2 * C), jnp.float32, -bound, bound)
    b = jax.random.uniform(kb, (2 * C,), jnp.float32, -bound, bound)

    out = ada_ins_norm(x, timestep, w, b, diffusion_step=diffusion_step)
    out = jax.block_until_ready(out)
    ref = ada_ins_norm_ref(x, timestep, w, b, diffusion_step=diffusion_step)
    assert out.shape == (B, L, C)
    assert jnp.allclose(out, ref, atol=1e-4, rtol=1e-4), (B, L, C)


if __name__ == "__main__":
    diffusion_step = 100
    key = jax.random.PRNGKey(0)
    k1, k2 = jax.random.split(key)

    # Small irregular-C case (single full-extent channel tile, masked stores).
    _run_case(k1, B=2, L=16, C=32, diffusion_step=diffusion_step)
    # Multiple-of-128 case exercising the multi-tile path: B==1 forces the
    # two-TensorCore split (tc = C//2 = 128) and the in-kernel pl.ds slice of
    # the resident scale/shift block.
    _run_case(k2, B=1, L=32, C=256, diffusion_step=diffusion_step)

    print("KERNEL_OK")
</pallas_src>

<mosaic_0001>
module attributes {stable_mosaic.version = 11 : i64} {
  func.func @adains_kernel(%arg0: i32, %arg1: i32, %arg2: memref<1x2x32xf32, #tpu.memory_space<vmem>>, %arg3: memref<1x16x32xf32, #tpu.memory_space<vmem>>, %arg4: memref<1x16x32xf32, #tpu.memory_space<vmem>>) attributes {dimension_semantics = [#tpu.dimension_semantics<parallel>, #tpu.dimension_semantics<parallel>], iteration_bounds = array<i64: 2, 1>, scalar_prefetch = 0 : i64, scratch_operands = 0 : i64, tpu.core_type = #tpu.core_type<tc>, window_params = [{transform_indices = @transform_0, window_bounds = array<i64: 1, 2, 32>}, {transform_indices = @transform_1, window_bounds = array<i64: 1, 16, 32>}, {transform_indices = @transform_2, window_bounds = array<i64: 1, 16, 32>}]} {
    %c0 = arith.constant 0 : index
    %c0_0 = arith.constant 0 : index
    %c0_1 = arith.constant 0 : index
    %0 = vector.load %arg3[%c0, %c0_0, %c0_1] : memref<1x16x32xf32, #tpu.memory_space<vmem>>, vector<1x16x32xf32>
    %1 = vector.shape_cast %0 : vector<1x16x32xf32> to vector<16x32xf32>
    %cst = arith.constant dense<0.000000e+00> : vector<32xf32>
    %2 = vector.multi_reduction <add>, %1, %cst [0] : vector<16x32xf32> to vector<32xf32>
    %3 = vector.shape_cast %2 : vector<32xf32> to vector<1x32xf32>
    %cst_2 = arith.constant 6.250000e-02 : f32
    %4 = vector.broadcast %cst_2 : f32 to vector<1x32xf32>
    %5 = arith.mulf %3, %4 : vector<1x32xf32>
    %6 = vector.broadcast %5 : vector<1x32xf32> to vector<16x32xf32>
    %7 = arith.subf %1, %6 : vector<16x32xf32>
    %8 = arith.mulf %7, %7 : vector<16x32xf32>
    %cst_3 = arith.constant dense<0.000000e+00> : vector<32xf32>
    %9 = vector.multi_reduction <add>, %8, %cst_3 [0] : vector<16x32xf32> to vector<32xf32>
    %10 = vector.shape_cast %9 : vector<32xf32> to vector<1x32xf32>
    %cst_4 = arith.constant 6.250000e-02 : f32
    %11 = vector.broadcast %cst_4 : f32 to vector<1x32xf32>
    %12 = arith.mulf %10, %11 : vector<1x32xf32>
    %cst_5 = arith.constant 9.99999974E-6 : f32
    %13 = vector.broadcast %cst_5 : f32 to vector<1x32xf32>
    %14 = arith.addf %12, %13 : vector<1x32xf32>
    %15 = math.rsqrt %14 : vector<1x32xf32>
    %16 = vector.broadcast %15 : vector<1x32xf32> to vector<16x32xf32>
    %17 = arith.mulf %7, %16 : vector<16x32xf32>
    %c0_6 = arith.constant 0 : index
    %c0_7 = arith.constant 0 : index
    %c0_8 = arith.constant 0 : index
    %18 = vector.load %arg2[%c0_6, %c0_7, %c0_8] : memref<1x2x32xf32, #tpu.memory_space<vmem>>, vector<1x2x32xf32>
    %19 = vector.shape_cast %18 : vector<1x2x32xf32> to vector<2x32xf32>
    %20 = vector.extract_strided_slice %19 {offsets = [0, 0], sizes = [1, 32], strides = [1, 1]} : vector<2x32xf32> to vector<1x32xf32>
    %21 = vector.extract_strided_slice %19 {offsets = [1, 0], sizes = [1, 32], strides = [1, 1]} : vector<2x32xf32> to vector<1x32xf32>
    %cst_9 = arith.constant 1.000000e+00 : f32
    %22 = vector.broadcast %cst_9 : f32 to vector<1x32xf32>
    %23 = arith.addf %22, %20 : vector<1x32xf32>
    %24 = vector.broadcast %23 : vector<1x32xf32> to vector<16x32xf32>
    %25 = arith.mulf %17, %24 : vector<16x32xf32>
    %26 = vector.broadcast %21 : vector<1x32xf32> to vector<16x32xf32>
    %27 = arith.addf %25, %26 : vector<16x32xf32>
    %c0_10 = arith.constant 0 : index
    %c0_11 = arith.constant 0 : index
    %c0_12 = arith.constant 0 : index
    %28 = vector.load %arg4[%c0_10, %c0_11, %c0_12] : memref<1x16x32xf32, #tpu.memory_space<vmem>>, vector<1x16x32xf32>
    %29 = vector.shape_cast %28 : vector<1x16x32xf32> to vector<16x32xf32>
    %30 = vector.shape_cast %27 : vector<16x32xf32> to vector<1x16x32xf32>
    tpu.vector_store %arg4[%c0_10, %c0_11, %c0_12], %30 {strides = array<i32>} : memref<1x16x32xf32, #tpu.memory_space<vmem>>, vector<1x16x32xf32>,
    return
  }
  func.func @transform_0(%arg0: i32, %arg1: i32) -> (i32, i32, i32) {
    %c0_i32 = arith.constant 0 : i32
    %c0_i32_0 = arith.constant 0 : i32
    %c0_i32_1 = arith.constant 0 : i32
    return %arg0, %c0_i32, %c0_i32_0 : i32, i32, i32
  }
  func.func @transform_1(%arg0: i32, %arg1: i32) -> (i32, i32, i32) {
    %c0_i32 = arith.constant 0 : i32
    %c0_i32_0 = arith.constant 0 : i32
    return %arg0, %c0_i32, %arg1 : i32, i32, i32
  }
  func.func @transform_2(%arg0: i32, %arg1: i32) -> (i32, i32, i32) {
    %c0_i32 = arith.constant 0 : i32
    %c0_i32_0 = arith.constant 0 : i32
    return %arg0, %c0_i32, %arg1 : i32, i32, i32
  }
}

</mosaic_0001>

<llo_original>
// kernel: tpu_custom_call.1
$region0: #{tpu_custom_call.1}
  #allocation0 [shape = 'u32[]', space=smem, size = 0x4, offset = 0x4, fixed_abs, tag = 'smem constant byte address 0x4 - core index']
  #allocation1 [shape = 'u32[144,128]{1,0:T(1,128)}', space=vmem, size = 0x12000, scoped, tag = 'internal scratch']
  %s0 = inlined_call_operand.hbm [shape: f32[2,2,32], index: 0, kind: input, shape index: {}]
  %s1 = inlined_call_operand.hbm [shape: f32[2,16,32], index: 1, kind: input, shape index: {}]
  %s2 = inlined_call_operand.hbm [shape: f32[2,16,32], index: 2, kind: output, shape index: {}]
  %s3 = sld [smem:[#allocation0]]
  $region49: #{tpu_custom_call.1} parent=0
    _
  %s5 = ssub.s32 1, %s3
  %s6 = scalar_select 0, %s5, %s3
  $region1: #{tpu_custom_call.1} parent=0
    #allocation2 [shape = 'u8[2048]{0}', space=vmem, size = 0x800, scoped, tag = 'input window, operand 0']
    #allocation3 [shape = 's32[2]{0}', space=sflag, size = 0x8, scoped, tag = 'scoped memory for tpu_custom_call.1']
    #allocation4 [shape = 's32[2]{0}', space=sflag, size = 0x8, scoped, tag = 'scoped memory for tpu_custom_call.1']
    #allocation5 [shape = 'u8[16384]{0}', space=vmem, size = 0x4000, scoped, tag = 'input window, operand 1']
    #allocation6 [shape = 's32[2]{0}', space=sflag, size = 0x8, scoped, tag = 'scoped memory for tpu_custom_call.1']
    #allocation7 [shape = 'u8[16384]{0}', space=vmem, size = 0x4000, scoped, tag = 'output window, operand 0']
    %7 = vsyncpa [#allocation3], 0
    %s8 = scalar_lea.sflag [#allocation3], 1
    %9 = vsyncpa %s8, 0
    %10 = vsyncpa [#allocation6], 0
    %s11 = scalar_lea.sflag [#allocation6], 1
    %12 = vsyncpa %s11, 0
    %13 = vsyncpa [#allocation4], 0
    %s14 = scalar_lea.sflag [#allocation4], 1
    %15 = vsyncpa %s14, 0
    loop: start=0, step=1, limit=4
    $region2: #{tpu_custom_call.1} parent=1 // loop_pre_header
      _
    $region3: #{tpu_custom_call.1} parent=1 // loop_header
      %s17 = sphi 0, %s21
      %p18 = scmp.ge.s32.totalorder %s17, 4
      %s24 = sphi 0, %s36
      %s25 = sphi 0, %s32
      %s26 = sphi 0, %s24
      %s27 = sphi 0, %s25
      %s28 = sphi 0, %s26
      %s29 = sphi 0, %s27
      %s39 = sphi 0, %s41
      %s42 = sphi 0, %s39
      %s43 = sphi 0, %s42
      %s59 = sphi 0, %s43
      %s67 = sphi 0, %s69
      %s70 = sphi 0, %s67
      %s71 = sphi 0, %s70
      %s87 = sphi 0, %s71
      %s95 = sphi 0, %s97
      %s98 = sphi 0, %s95
      %s99 = sphi 0, %s98
      %s115 = sphi 0, %s99
    $region4: #{tpu_custom_call.1} parent=1 // loop_header_branch
      %20 = sbr.rel (%p18) target = $region8
    $region5: #{tpu_custom_call.1} parent=1 // loop_body
      %s22 = ssub.s32 %s17, 1
      %s23 = ssub.s32 %s17, 2
      %s30 = sadd.s32 1, %s25
      %p31 = scmp.ge.s32.totalorder %s30, 1
      %s32 = scalar_select %p31, 0, %s30
      %s33 = sadd.s32 1, %s24
      %s34 = scalar_select %p31, %s33, %s24
      %p35 = scmp.ge.s32.totalorder %s34, 2
      %s36 = scalar_select %p35, 0, %s34
      %s37 = ssub.s32 %s24, %s36
      %p38 = scmp.eq.s32.totalorder %s37, 0
      %s40 = sadd.s32 %s39, 1
      %s41 = scalar_select %p38, %s39, %s40
      %p44 = pneg %p38
      %p45 = scmp.eq.s32.totalorder %s17, 1
      %p46 = por %p44, %p45
      %p47 = scmp.ne.s32.totalorder %s39, %s42
      %p48 = scmp.eq.s32.totalorder %s17, 0
      %p49 = por %p47, %p48
      %p50 = scmp.ne.s32.totalorder %s39, %s42
      %p51 = scmp.eq.s32.totalorder %s22, 1
      %p52 = por %p50, %p51
      %p53 = scmp.ne.s32.totalorder %s42, %s43
      %p54 = scmp.eq.s32.totalorder %s22, 0
      %p55 = por %p53, %p54
      %p56 = scmp.ne.s32.totalorder %s42, %s43
      %p57 = scmp.eq.s32.totalorder %s23, 1
      %p58 = por %p56, %p57
      %p60 = scmp.ne.s32.totalorder %s43, %s59
      %p61 = scmp.eq.s32.totalorder %s23, 0
      %p62 = por %p60, %p61
      %s63 = ssub.s32 %s24, %s36
      %s64 = ssub.s32 %s25, %s32
      %s65 = sor.u32 %s63, %s64
      %p66 = scmp.eq.s32.totalorder %s65, 0
      %s68 = sadd.s32 %s67, 1
      %s69 = scalar_select %p66, %s67, %s68
      %p72 = pneg %p66
      %p73 = scmp.eq.s32.totalorder %s17, 1
      %p74 = por %p72, %p73
      %p75 = scmp.ne.s32.totalorder %s67, %s70
      %p76 = scmp.eq.s32.totalorder %s17, 0
      %p77 = por %p75, %p76
      %p78 = scmp.ne.s32.totalorder %s67, %s70
      %p79 = scmp.eq.s32.totalorder %s22, 1
      %p80 = por %p78, %p79
      %p81 = scmp.ne.s32.totalorder %s70, %s71
      %p82 = scmp.eq.s32.totalorder %s22, 0
      %p83 = por %p81, %p82
      %p84 = scmp.ne.s32.totalorder %s70, %s71
      %p85 = scmp.eq.s32.totalorder %s23, 1
      %p86 = por %p84, %p85
      %p88 = scmp.ne.s32.totalorder %s71, %s87
      %p89 = scmp.eq.s32.totalorder %s23, 0
      %p90 = por %p88, %p89
      %s91 = ssub.s32 %s24, %s36
      %s92 = ssub.s32 %s25, %s32
      %s93 = sor.u32 %s91, %s92
      %p94 = scmp.eq.s32.totalorder %s93, 0
      %s96 = sadd.s32 %s95, 1
      %s97 = scalar_select %p94, %s95, %s96
      %p100 = pneg %p94
      %p101 = scmp.eq.s32.totalorder %s17, 1
      %p102 = por %p100, %p101
      %p103 = scmp.ne.s32.totalorder %s95, %s98
      %p104 = scmp.eq.s32.totalorder %s17, 0
      %p105 = por %p103, %p104
      %p106 = scmp.ne.s32.totalorder %s95, %s98
      %p107 = scmp.eq.s32.totalorder %s22, 1
      %p108 = por %p106, %p107
      %p109 = scmp.ne.s32.totalorder %s98, %s99
      %p110 = scmp.eq.s32.totalorder %s22, 0
      %p111 = por %p109, %p110
      %p112 = scmp.ne.s32.totalorder %s98, %s99
      %p113 = scmp.eq.s32.totalorder %s23, 1
      %p114 = por %p112, %p113
      %p116 = scmp.ne.s32.totalorder %s99, %s115
      %p117 = scmp.eq.s32.totalorder %s23, 0
      %p118 = por %p116, %p117
      %p119 = scmp.le.s32.totalorder 1, %s17
      %p120 = scmp.lt.s32.totalorder %s17, 3
      %p121 = pnand %p119, %p120
      %p122 = pneg %p121
      // Predicated region
      $region9: #{tpu_custom_call.1} parent=5 // pred_check
        _
      $region10: #{tpu_custom_call.1} parent=5 // pred_check_branch
        %124 = sbr.rel (%p121) target = $region12
      $region11: #{tpu_custom_call.1} parent=5 // pred_region
        %s125 = ssub.s32 %s17, 1
      $region12: #{tpu_custom_call.1} parent=5 // pred_fallthru
        _
      %p126 = scmp.lt.s32.totalorder %s17, 2
      // Predicated region
      $region13: #{tpu_custom_call.1} parent=5 // pred_check
        %p127 = pneg %p126
      $region14: #{tpu_custom_call.1} parent=5 // pred_check_branch
        %129 = sbr.rel (%p127) target = $region16
      $region15: #{tpu_custom_call.1} parent=5 // pred_region
        // Predicated region
        $region17: #{tpu_custom_call.1} parent=15 // pred_check
          %p130 = pneg %p49
        $region18: #{tpu_custom_call.1} parent=15 // pred_check_branch
          %132 = sbr.rel (%p130) target = $region20
        $region19: #{tpu_custom_call.1} parent=15 // pred_region
          %s133 = sand.u32 %s39, 1
          %s134 = scalar_lea.sflag [#allocation3], %s133
          %s135 = sand.u32 %s39, 1
          %s136 = smul.addr %s135, 2
          %s137 = scalar_lea.vmem [#allocation2], %s136
          %s139 = ssub.s32 32, 32
          %140 = vsyncadd %s134, %s139
          %s141 = smul.addr %s24, 32
          %s142 = scalar_lea.hbm %s0, %s141
          %s144 = sshll.u32 %s137, 4
          %s145 = int_to_ptr.vmem [resolvable:$true] %s144
          %147 = dma.hbm_to_vmem [thread:$0]  %s142, 32, %s145, %s134
        $region20: #{tpu_custom_call.1} parent=15 // pred_fallthru
          _
        // Predicated region
        $region21: #{tpu_custom_call.1} parent=15 // pred_check
          %p148 = pneg %p77
        $region22: #{tpu_custom_call.1} parent=15 // pred_check_branch
          %150 = sbr.rel (%p148) target = $region24
        $region23: #{tpu_custom_call.1} parent=15 // pred_region
          %s151 = sand.u32 %s67, 1
          %s152 = scalar_lea.sflag [#allocation6], %s151
          %s153 = sand.u32 %s67, 1
          %s154 = smul.addr %s153, 16
          %s155 = scalar_lea.vmem [#allocation5], %s154
          %s157 = ssub.s32 256, 256
          %158 = vsyncadd %s152, %s157
          %s159 = smul.addr %s24, 2
          %s160 = sadd.s32 %s25, %s159
          %s161 = smul.addr %s160, 128
          %s162 = scalar_lea.hbm %s1, %s161
          %s163 = sshll.u32 %s155, 4
          %s164 = int_to_ptr.vmem [resolvable:$true] %s163
          %169 = dma.hbm_to_vmem [thread:$0]  %s162, 256, %s164, %s152, 128, 128, 8
        $region24: #{tpu_custom_call.1} parent=15 // pred_fallthru
          _
      $region16: #{tpu_custom_call.1} parent=5 // pred_fallthru
        _
      %p170 = scmp.le.s32.totalorder 1, %s17
      %p171 = scmp.lt.s32.totalorder %s17, 3
      %p172 = pnand %p170, %p171
      %p173 = pneg %p172
      // Predicated region
      $region25: #{tpu_custom_call.1} parent=5 // pred_check
        _
      $region26: #{tpu_custom_call.1} parent=5 // pred_check_branch
        %175 = sbr.rel (%p172) target = $region28
      $region27: #{tpu_custom_call.1} parent=5 // pred_region
        %s176 = ssub.s32 %s17, 1
        %s177 = sand.u32 %s42, 1
        %s178 = scalar_lea.sflag [#allocation3], %s177
        %s179 = sand.u32 %s42, 1
        %s180 = smul.addr %s179, 2
        %s181 = scalar_lea.vmem [#allocation2], %s180
        // Predicated region
        $region29: #{tpu_custom_call.1} parent=27 // pred_check
          %p182 = pneg %p55
        $region30: #{tpu_custom_call.1} parent=27 // pred_check_branch
          %184 = sbr.rel (%p182) target = $region32
        $region31: #{tpu_custom_call.1} parent=27 // pred_region
          %185 = dma.done %s178, 32
        $region32: #{tpu_custom_call.1} parent=27 // pred_fallthru
          _
        %s186 = sand.u32 %s70, 1
        %s187 = scalar_lea.sflag [#allocation6], %s186
        %s188 = sand.u32 %s70, 1
        %s189 = smul.addr %s188, 16
        %s190 = scalar_lea.vmem [#allocation5], %s189
        // Predicated region
        $region33: #{tpu_custom_call.1} parent=27 // pred_check
          %p191 = pneg %p83
        $region34: #{tpu_custom_call.1} parent=27 // pred_check_branch
          %193 = sbr.rel (%p191) target = $region36
        $region35: #{tpu_custom_call.1} parent=27 // pred_region
          %194 = dma.done %s187, 256
        $region36: #{tpu_custom_call.1} parent=27 // pred_fallthru
          _
        %s195 = sand.u32 %s42, 1
        %s196 = scalar_lea.sflag [#allocation3], %s195
        %s197 = sand.u32 %s42, 1
        %s198 = smul.addr %s197, 2
        %s199 = scalar_lea.vmem [#allocation2], %s198
        %p200 = pneg %p55
        %p201 = pneg %p52
        %s202 = sand.u32 %s70, 1
        %s203 = scalar_lea.sflag [#allocation6], %s202
        %s204 = sand.u32 %s70, 1
        %s205 = smul.addr %s204, 16
        %s206 = scalar_lea.vmem [#allocation5], %s205
        %p207 = pneg %p83
        %p208 = pneg %p80
        %p209 = pneg %p111
        %p210 = pneg %p108
        %s211 = sand.u32 %s98, 1
        %s212 = scalar_lea.sflag [#allocation4], %s211
        %s213 = sand.u32 %s98, 1
        %s214 = smul.addr %s213, 16
        %s215 = scalar_lea.vmem [#allocation7], %s214
        %v216 = vld [vmem:[%s190] sm:$0xff]
        %v217 = vld [vmem:[%s190 + $0x8] sm:$0xff]
        %vm218 = vcmask 261120
        %v219 = vsel %vm218, %v216, 0.0
        %v220 = vsel %vm218, %v217, 0.0
        %v221 = vadd.f32 %v219, %v220
        %v222 = vrot.slane %v221, 4
        %v223 = vadd.f32 %v221, %v222
        %v224 = vrot.slane %v223, 2
        %v225 = vadd.f32 %v223, %v224
        %v226 = vrot.slane %v225, 1
        %v227 = vadd.f32 %v225, %v226
        %v228 = vmul.f32 %v227, 0.0625
        %v229 = vsub.f32 %v216, %v228
        %v230 = vsub.f32 %v217, %v228
        %v231 = vmul.f32 %v229, %v229
        %v232 = vmul.f32 %v230, %v230
        %v233 = vsel %vm218, %v231, 0.0
        %v234 = vsel %vm218, %v232, 0.0
        %v235 = vadd.f32 %v233, %v234
        %v236 = vrot.slane %v235, 4
        %v237 = vadd.f32 %v235, %v236
        %v238 = vrot.slane %v237, 2
        %v239 = vadd.f32 %v237, %v238
        %v240 = vrot.slane %v239, 1
        %v241 = vadd.f32 %v239, %v240
        %v242 = vmul.f32 %v241, 0.0625
        %v243 = vadd.f32 %v242, 1e-05
        %v244 = vrsqrt.pop %v243
        %v245 = vmul.f32 %v229, %v244
        %v246 = vmul.f32 %v230, %v244
        %v247 = vld [vmem:[%s181] sm:$0x3]
        %v248 = vadd.f32 %v247, 1.0
        %v249 = vlaneseq
        %v250 = vshrl.u32 %v249, 7
        %v251 = vsub.s32 0, %v250
        %v252 = vrot.slane %v248, %v251
        %v253 = vmul.f32 %v245, %v252
        %v254 = vmul.f32 %v246, %v252
        %v255 = vlaneseq
        %v256 = vshrl.u32 %v255, 7
        %v257 = vsub.s32 1, %v256
        %v258 = vrot.slane %v247, %v257
        %v259 = vadd.f32 %v253, %v258
        %v260 = vadd.f32 %v254, %v258
        %261 = vst.msk [vmem:[%s215] sm:$0xff] %vm218, %v259
        %262 = vst.msk [vmem:[%s215 + $0x8] sm:$0xff] %vm218, %v260
        %s263 = sand.u32 %s98, 1
        %s264 = scalar_lea.sflag [#allocation4], %s263
        %s265 = sand.u32 %s98, 1
        %s266 = smul.addr %s265, 16
        %s267 = scalar_lea.vmem [#allocation7], %s266
        // Predicated region
        $region37: #{tpu_custom_call.1} parent=27 // pred_check
          %p268 = pneg %p108
        $region38: #{tpu_custom_call.1} parent=27 // pred_check_branch
          %270 = sbr.rel (%p268) target = $region40
        $region39: #{tpu_custom_call.1} parent=27 // pred_region
          %s272 = ssub.s32 256, 256
          %273 = vsyncadd %s264, %s272
          %s274 = smul.addr %s26, 2
          %s275 = sadd.s32 %s27, %s274
          %s276 = smul.addr %s275, 128
          %s277 = scalar_lea.hbm %s2, %s276
          %s278 = sshll.u32 %s267, 4
          %s279 = int_to_ptr.vmem [resolvable:$true] %s278
          %284 = dma.vmem_to_hbm [thread:$0]  %s279, 256, %s277, %s264, 128, 128, 8
        $region40: #{tpu_custom_call.1} parent=27 // pred_fallthru
          _
      $region28: #{tpu_custom_call.1} parent=5 // pred_fallthru
        _
      %p285 = scmp.le.s32.totalorder 2, %s17
      // Predicated region
      $region41: #{tpu_custom_call.1} parent=5 // pred_check
        %p286 = pneg %p285
      $region42: #{tpu_custom_call.1} parent=5 // pred_check_branch
        %288 = sbr.rel (%p286) target = $region44
      $region43: #{tpu_custom_call.1} parent=5 // pred_region
        %s289 = ssub.s32 %s17, 2
        // Predicated region
        $region45: #{tpu_custom_call.1} parent=43 // pred_check
          %p290 = pneg %p114
        $region46: #{tpu_custom_call.1} parent=43 // pred_check_branch
          %292 = sbr.rel (%p290) target = $region48
        $region47: #{tpu_custom_call.1} parent=43 // pred_region
          %s293 = sand.u32 %s99, 1
          %s294 = scalar_lea.sflag [#allocation4], %s293
          %s295 = sand.u32 %s99, 1
          %s296 = smul.addr %s295, 16
          %s297 = scalar_lea.vmem [#allocation7], %s296
          %298 = dma.done %s294, 256
        $region48: #{tpu_custom_call.1} parent=43 // pred_fallthru
          _
      $region44: #{tpu_custom_call.1} parent=5 // pred_fallthru
        _
    $region6: #{tpu_custom_call.1} parent=1 // loop_footer
      %s21 = sadd.s32 1, %s17
    $region7: #{tpu_custom_call.1} parent=1 // loop_footer_branch
      %16 = sbr.rel target = $region3
    $region8: #{tpu_custom_call.1} parent=1 // loop_exit
      _
    %299 = vsyncpa [#allocation3], 1
    %s300 = scalar_lea.sflag [#allocation3], 1
    %301 = vsyncpa %s300, 1
    %302 = vsyncpa [#allocation6], 1
    %s303 = scalar_lea.sflag [#allocation6], 1
    %304 = vsyncpa %s303, 1
    %305 = vsyncpa [#allocation4], 1
    %s306 = scalar_lea.sflag [#allocation4], 1
    %307 = vsyncpa %s306, 1

</llo_original>
